<compile_context>
chip_gen: v5e
topology: v5e:2x2
jax: 0.10.0
libtpu: 0.0.40
codegen_flags: <defaults>
</compile_context>

<pallas_src>
import jax
import jax.numpy as jnp
from jax.experimental import pallas as pl
from jax.experimental.pallas import tpu as pltpu

A_THRESH = 0.5        # `a` in the PyTorch script
P_THRESH = 0.5        # `p` in the PyTorch script
INPUT_SIZE = 4
HIDDEN_SIZE = 20
HP = 128              # lane-aligned (padded) per-gate width
ATANH_P = 0.5493061443340549   # atanh(0.5): tanh(z) > 0.5  <=>  z > atanh(0.5)


def _round_up(n, m):
    return ((n + m - 1) // m) * m


def _make_seq_kernel(b_real, tt, t_real):
    """Time-blocked LSTM-cell kernel: TT steps per grid iteration."""
    thr = float(b_real * HIDDEN_SIZE * A_THRESH)
    guard_tail = (t_real % tt) != 0   # static: only emit tail masking if needed

    def kernel(zx_ref, h0_ref, c0_ref, wh_ref, mask_ref, hc_ref, h_scr, c_scr):
        tb = pl.program_id(0)

        # Carry h/c in VMEM scratch across the (sequential) time-block axis.
        @pl.when(tb == 0)
        def _init():
            h_scr[...] = h0_ref[...]
            c_scr[...] = c0_ref[...]

        wh = wh_ref[...]            # [HP, 4*HP], resident
        mask = mask_ref[...]        # [Bp, HP] f32 0/1 valid mask (hoisted)

        def step(j, carry):
            h, c = carry
            # Recurrent matmul only; x-projection + bias precomputed outside.
            z = jnp.dot(h, wh, preferred_element_type=jnp.float32) + zx_ref[j]

            # 128-lane-aligned pre-activation gate slices (free vreg selects).
            z_i = z[:, 0 * HP:1 * HP]
            z_f = z[:, 1 * HP:2 * HP]
            z_g = z[:, 2 * HP:3 * HP]
            z_o = z[:, 3 * HP:4 * HP]

            # Pre-activation threshold counts: XLU reduce overlaps EUP work.
            # sigmoid(z)>0.5 <=> z>0 (exact); tanh(z)>0.5 <=> z>atanh(0.5).
            count_i = jnp.sum(mask * (z_i > 0.0).astype(jnp.float32))
            count_g = jnp.sum(mask * (z_g > ATANH_P).astype(jnp.float32))

            i = jax.nn.sigmoid(z_i)
            f = jax.nn.sigmoid(z_f)
            g = jnp.tanh(z_g)
            o = jax.nn.sigmoid(z_o)

            fc = f * c

            # Data-dependent branch of the PyTorch module as selects.  Ties
            # (count == thr) fall through to the i*g branch, matching the
            # strict < / > comparisons of the original if/elif/else.
            cond1 = jnp.logical_and(count_g < thr, count_i > thr)   # -> fc + i
            cond2 = jnp.logical_and(count_g > thr, count_i < thr)   # -> fc + g
            addend = jnp.where(cond1, i, jnp.where(cond2, g, i * g))

            c_next = fc + addend
            h_next = o * jnp.tanh(c_next)

            if guard_tail:
                # Padded timesteps (T rounded up to a multiple of TT) are
                # no-ops: keep previous state.
                valid = (tb * tt + j) < t_real
                h_next = jnp.where(valid, h_next, h)
                c_next = jnp.where(valid, c_next, c)
            return (h_next, c_next)

        h, c = jax.lax.fori_loop(0, tt, step, (h_scr[...], c_scr[...]),
                                 unroll=True)
        h_scr[...] = h
        c_scr[...] = c

        # Only the final step's state ever reaches HBM: store once at the end.
        @pl.when(tb == pl.num_programs(0) - 1)
        def _store():
            hc_ref[:, 0:HP] = h           # lane-dense packed [Bp, 2*HP] slab
            hc_ref[:, HP:2 * HP] = c

    return kernel


def simple_lstm_cell_sequence(xs, cur_state, wx_p, wh_p, b_p, *, tt=None):
    """Apply the cell over xs[t], t=0..T-1, in ONE pallas_call.

    xs: [T, B, INPUT_SIZE], cur_state = (h0 [B,H], c0 [B,H]).
    Returns (h_T, c_T), each [B, HIDDEN_SIZE].
    """
    h0, c0 = cur_state
    T, B, _ = xs.shape
    bp = _round_up(max(B, 8), 8)
    if tt is None:
        tt = min(T, 16)               # time-block size (inner unrolled steps)
    t_pad = _round_up(T, tt)

    xs_p = jnp.pad(xs, ((0, t_pad - T), (0, bp - B), (0, 0)))
    h0_p = jnp.pad(h0, ((0, bp - B), (0, HP - HIDDEN_SIZE)))
    c0_p = jnp.pad(c0, ((0, bp - B), (0, HP - HIDDEN_SIZE)))

    # Precompute zx[t] = x[t] @ Wx + b for the whole sequence as ONE matmul
    # with good MXU M-occupancy (M = T*Bp), outside the recurrent kernel.
    zx = (xs_p.reshape(t_pad * bp, INPUT_SIZE) @ wx_p + b_p)
    zx = zx.reshape(t_pad, bp, 4 * HP).astype(jnp.float32)

    # Loop-invariant valid mask over the REAL B x HIDDEN elements.
    mask = ((jnp.arange(bp)[:, None] < B)
            & (jnp.arange(HP)[None, :] < HIDDEN_SIZE)).astype(jnp.float32)

    grid_spec = pltpu.PrefetchScalarGridSpec(
        num_scalar_prefetch=0,
        grid=(t_pad // tt,),
        in_specs=[
            pl.BlockSpec((tt, bp, 4 * HP), lambda t: (t, 0, 0)),   # zx block
            pl.BlockSpec((bp, HP), lambda t: (0, 0)),              # h0
            pl.BlockSpec((bp, HP), lambda t: (0, 0)),              # c0
            pl.BlockSpec((HP, 4 * HP), lambda t: (0, 0)),          # Wh
            pl.BlockSpec((bp, HP), lambda t: (0, 0)),              # valid mask
        ],
        out_specs=pl.BlockSpec((bp, 2 * HP), lambda t: (0, 0)),
        scratch_shapes=[pltpu.VMEM((bp, HP), jnp.float32),         # h carry
                        pltpu.VMEM((bp, HP), jnp.float32)],        # c carry
    )

    hc = pl.pallas_call(
        _make_seq_kernel(B, tt, T),
        out_shape=jax.ShapeDtypeStruct((bp, 2 * HP), jnp.float32),
        grid_spec=grid_spec,
        compiler_params=pltpu.CompilerParams(
            dimension_semantics=("arbitrary",)),   # time axis carries state
    )(zx, h0_p, c0_p, wh_p, mask)

    h_t = hc[:B, 0:HIDDEN_SIZE]
    c_t = hc[:B, HP:HP + HIDDEN_SIZE]
    return h_t, c_t


def simple_lstm_cell(x, cur_state, wx_p, wh_p, b_p):
    """Single-step forward matching SimpleLSTMCell.forward(x, (h, c))."""
    return simple_lstm_cell_sequence(x[None], cur_state, wx_p, wh_p, b_p, tt=1)


# ----------------------------------------------------------------------------
# Parameter construction (mimics 4 x nn.Linear(input+hidden, hidden) default
# init, uniform +-1/sqrt(fan_in)), plus packing into the lane-aligned layout.
# ----------------------------------------------------------------------------
def init_params(key, input_size, hidden_size):
    d = input_size + hidden_size
    bound = 1.0 / (d ** 0.5)
    gates = []
    for kg in jax.random.split(key, 4):            # order: i, f, g, o
        kx, kh, kb = jax.random.split(kg, 3)
        wx = jax.random.uniform(kx, (input_size, hidden_size),
                                minval=-bound, maxval=bound, dtype=jnp.float32)
        wh = jax.random.uniform(kh, (hidden_size, hidden_size),
                                minval=-bound, maxval=bound, dtype=jnp.float32)
        b = jax.random.uniform(kb, (hidden_size,),
                               minval=-bound, maxval=bound, dtype=jnp.float32)
        gates.append((wx, wh, b))
    return gates


def pack_params(gates):
    """Pack per-gate params into 128-lane-aligned stacked weights."""
    wx_p = jnp.zeros((INPUT_SIZE, 4 * HP), jnp.float32)
    wh_p = jnp.zeros((HP, 4 * HP), jnp.float32)
    b_p = jnp.zeros((1, 4 * HP), jnp.float32)
    for k, (wx, wh, b) in enumerate(gates):
        off = k * HP
        wx_p = wx_p.at[:, off:off + HIDDEN_SIZE].set(wx)
        wh_p = wh_p.at[:HIDDEN_SIZE, off:off + HIDDEN_SIZE].set(wh)
        b_p = b_p.at[:, off:off + HIDDEN_SIZE].set(b[None, :])
    return wx_p, wh_p, b_p


# ----------------------------------------------------------------------------
# Pure-JAX reference (mirrors the PyTorch module exactly), used to verify.
# ----------------------------------------------------------------------------
def ref_cell(x, h_cur, c_cur, gates):
    (wxi, whi, bi), (wxf, whf, bf), (wxg, whg, bg), (wxo, who, bo) = gates
    i = jax.nn.sigmoid(x @ wxi + h_cur @ whi + bi)
    f = jax.nn.sigmoid(x @ wxf + h_cur @ whf + bf)
    g = jnp.tanh(x @ wxg + h_cur @ whg + bg)
    o = jax.nn.sigmoid(x @ wxo + h_cur @ who + bo)
    fc = f * c_cur
    total = g.size
    cg = int(jnp.sum(g > P_THRESH))
    ci = int(jnp.sum(i > P_THRESH))
    if cg < total * A_THRESH and ci > total * A_THRESH:
        c_next = fc + i
    elif cg > total * A_THRESH and ci < total * A_THRESH:
        c_next = fc + g
    else:
        c_next = fc + i * g
    return o * jnp.tanh(c_next), c_next


if __name__ == "__main__":
    key = jax.random.PRNGKey(0)
    k_x, k_h, k_c, k_p, k_seq, k_seq2 = jax.random.split(key, 6)

    B = 2
    x = jax.random.normal(k_x, (B, INPUT_SIZE), dtype=jnp.float32)
    h0 = jax.random.normal(k_h, (B, HIDDEN_SIZE), dtype=jnp.float32)
    c0 = jax.random.normal(k_c, (B, HIDDEN_SIZE), dtype=jnp.float32)

    gates = init_params(k_p, INPUT_SIZE, HIDDEN_SIZE)
    wx_p, wh_p, b_p = pack_params(gates)

    # Single-step forward (matches SimpleLSTMCell.forward semantics).
    h1, c1 = simple_lstm_cell(x, (h0, c0), wx_p, wh_p, b_p)
    jax.block_until_ready((h1, c1))
    assert h1.shape == (B, HIDDEN_SIZE) and c1.shape == (B, HIDDEN_SIZE)
    h1_ref, c1_ref = ref_cell(x, h0, c0, gates)
    assert jnp.allclose(h1, h1_ref, atol=1e-5), "single-step h mismatch"
    assert jnp.allclose(c1, c1_ref, atol=1e-5), "single-step c mismatch"

    # Fused multi-timestep forward: one pallas_call, time-blocked grid.
    T = 8
    xs = jax.random.normal(k_seq, (T, B, INPUT_SIZE), dtype=jnp.float32)
    hT, cT = simple_lstm_cell_sequence(xs, (h0, c0), wx_p, wh_p, b_p)
    jax.block_until_ready((hT, cT))
    h_ref, c_ref = h0, c0
    for t in range(T):
        h_ref, c_ref = ref_cell(xs[t], h_ref, c_ref, gates)
    assert jnp.allclose(hT, h_ref, atol=1e-4), "sequence h mismatch"
    assert jnp.allclose(cT, c_ref, atol=1e-4), "sequence c mismatch"

    # Ragged T + multi-block grid path (exercises tail guard and the
    # cross-grid-step state carry in VMEM scratch).
    T2 = 11
    xs2 = jax.random.normal(k_seq2, (T2, B, INPUT_SIZE), dtype=jnp.float32)
    hT2, cT2 = simple_lstm_cell_sequence(xs2, (h0, c0), wx_p, wh_p, b_p, tt=4)
    jax.block_until_ready((hT2, cT2))
    h_ref2, c_ref2 = h0, c0
    for t in range(T2):
        h_ref2, c_ref2 = ref_cell(xs2[t], h_ref2, c_ref2, gates)
    assert jnp.allclose(hT2, h_ref2, atol=1e-4), "ragged sequence h mismatch"
    assert jnp.allclose(cT2, c_ref2, atol=1e-4), "ragged sequence c mismatch"

    print("KERNEL_OK")
</pallas_src>

<mosaic_0001>
module attributes {stable_mosaic.version = 11 : i64} {
  func.func @kernel(%arg0: i32, %arg1: memref<1x8x512xf32, #tpu.memory_space<vmem>>, %arg2: memref<8x128xf32, #tpu.memory_space<vmem>>, %arg3: memref<8x128xf32, #tpu.memory_space<vmem>>, %arg4: memref<128x512xf32, #tpu.memory_space<vmem>>, %arg5: memref<8x128xf32, #tpu.memory_space<vmem>>, %arg6: memref<8x256xf32, #tpu.memory_space<vmem>>, %arg7: memref<8x128xf32, #tpu.memory_space<vmem>>, %arg8: memref<8x128xf32, #tpu.memory_space<vmem>>) attributes {dimension_semantics = [#tpu.dimension_semantics<arbitrary>], iteration_bounds = array<i64: 1>, scalar_prefetch = 0 : i64, scratch_operands = 2 : i64, tpu.core_type = #tpu.core_type<tc>, window_params = [{transform_indices = @transform_0, window_bounds = array<i64: 1, 8, 512>}, {pipeline_mode = #tpu.pipeline_mode<synchronous>, transform_indices = @transform_1, window_bounds = array<i64: 8, 128>}, {pipeline_mode = #tpu.pipeline_mode<synchronous>, transform_indices = @transform_2, window_bounds = array<i64: 8, 128>}, {pipeline_mode = #tpu.pipeline_mode<synchronous>, transform_indices = @transform_3, window_bounds = array<i64: 128, 512>}, {pipeline_mode = #tpu.pipeline_mode<synchronous>, transform_indices = @transform_4, window_bounds = array<i64: 8, 128>}, {pipeline_mode = #tpu.pipeline_mode<synchronous>, transform_indices = @transform_5, window_bounds = array<i64: 8, 256>}]} {
    %c0_i32 = arith.constant 0 : i32
    %0 = arith.cmpi eq, %arg0, %c0_i32 : i32
    %1 = arith.extui %0 : i1 to i32
    %c0_i32_0 = arith.constant 0 : i32
    %2 = arith.cmpi ne, %1, %c0_i32_0 : i32
    scf.if %2 {
      %c0_28 = arith.constant 0 : index
      %c0_29 = arith.constant 0 : index
      %68 = vector.load %arg2[%c0_28, %c0_29] : memref<8x128xf32, #tpu.memory_space<vmem>>, vector<8x128xf32>
      %c0_30 = arith.constant 0 : index
      %c0_31 = arith.constant 0 : index
      %69 = vector.load %arg7[%c0_30, %c0_31] : memref<8x128xf32, #tpu.memory_space<vmem>>, vector<8x128xf32>
      tpu.vector_store %arg7[%c0_30, %c0_31], %68 {strides = array<i32>} : memref<8x128xf32, #tpu.memory_space<vmem>>, vector<8x128xf32>,
      %c0_32 = arith.constant 0 : index
      %c0_33 = arith.constant 0 : index
      %70 = vector.load %arg3[%c0_32, %c0_33] : memref<8x128xf32, #tpu.memory_space<vmem>>, vector<8x128xf32>
      %c0_34 = arith.constant 0 : index
      %c0_35 = arith.constant 0 : index
      %71 = vector.load %arg8[%c0_34, %c0_35] : memref<8x128xf32, #tpu.memory_space<vmem>>, vector<8x128xf32>
      tpu.vector_store %arg8[%c0_34, %c0_35], %70 {strides = array<i32>} : memref<8x128xf32, #tpu.memory_space<vmem>>, vector<8x128xf32>,
    } else {
    }
    %c0 = arith.constant 0 : index
    %c0_1 = arith.constant 0 : index
    %3 = vector.load %arg4[%c0, %c0_1] : memref<128x512xf32, #tpu.memory_space<vmem>>, vector<128x512xf32>
    %c0_2 = arith.constant 0 : index
    %c0_3 = arith.constant 0 : index
    %4 = vector.load %arg5[%c0_2, %c0_3] : memref<8x128xf32, #tpu.memory_space<vmem>>, vector<8x128xf32>
    %c0_4 = arith.constant 0 : index
    %c0_5 = arith.constant 0 : index
    %5 = vector.load %arg7[%c0_4, %c0_5] : memref<8x128xf32, #tpu.memory_space<vmem>>, vector<8x128xf32>
    %c0_6 = arith.constant 0 : index
    %c0_7 = arith.constant 0 : index
    %6 = vector.load %arg8[%c0_6, %c0_7] : memref<8x128xf32, #tpu.memory_space<vmem>>, vector<8x128xf32>
    %c0_i32_8 = arith.constant 0 : i32
    %cst = arith.constant dense<0.000000e+00> : vector<8x512xf32>
    %7 = tpu.matmul %5, %3, %cst {dimension_numbers = #tpu.dot_dimension_numbers<[1], [0], [0], [1], [0, 0, 1, 1], [], []>} : vector<8x128xf32>, vector<128x512xf32>, vector<8x512xf32> -> vector<8x512xf32>
    %8 = arith.index_cast %c0_i32_8 : i32 to index
    %c0_9 = arith.constant 0 : index
    %c0_10 = arith.constant 0 : index
    %9 = vector.load %arg1[%8, %c0_9, %c0_10] : memref<1x8x512xf32, #tpu.memory_space<vmem>>, vector<1x8x512xf32>
    %10 = vector.shape_cast %9 : vector<1x8x512xf32> to vector<8x512xf32>
    %11 = arith.addf %7, %10 : vector<8x512xf32>
    %12 = vector.extract_strided_slice %11 {offsets = [0, 0], sizes = [8, 128], strides = [1, 1]} : vector<8x512xf32> to vector<8x128xf32>
    %13 = vector.extract_strided_slice %11 {offsets = [0, 128], sizes = [8, 128], strides = [1, 1]} : vector<8x512xf32> to vector<8x128xf32>
    %14 = vector.extract_strided_slice %11 {offsets = [0, 256], sizes = [8, 128], strides = [1, 1]} : vector<8x512xf32> to vector<8x128xf32>
    %15 = vector.extract_strided_slice %11 {offsets = [0, 384], sizes = [8, 128], strides = [1, 1]} : vector<8x512xf32> to vector<8x128xf32>
    %cst_11 = arith.constant 0.000000e+00 : f32
    %16 = vector.broadcast %cst_11 : f32 to vector<8x128xf32>
    %17 = arith.cmpf ogt, %12, %16 : vector<8x128xf32>
    %18 = arith.extui %17 : vector<8x128xi1> to vector<8x128xi32>
    %19 = arith.sitofp %18 : vector<8x128xi32> to vector<8x128xf32>
    %20 = arith.mulf %4, %19 : vector<8x128xf32>
    %21 = vector.shape_cast %20 : vector<8x128xf32> to vector<1x8x128xf32>
    %cst_12 = arith.constant dense<0.000000e+00> : vector<1xf32>
    %22 = vector.multi_reduction <add>, %21, %cst_12 [1, 2] : vector<1x8x128xf32> to vector<1xf32>
    %23 = vector.shape_cast %22 : vector<1xf32> to vector<1x1x1xf32>
    %24 = vector.extract %23[0, 0, 0] : f32 from vector<1x1x1xf32>
    %cst_13 = arith.constant 0.549306154 : f32
    %25 = vector.broadcast %cst_13 : f32 to vector<8x128xf32>
    %26 = arith.cmpf ogt, %14, %25 : vector<8x128xf32>
    %27 = arith.extui %26 : vector<8x128xi1> to vector<8x128xi32>
    %28 = arith.sitofp %27 : vector<8x128xi32> to vector<8x128xf32>
    %29 = arith.mulf %4, %28 : vector<8x128xf32>
    %30 = vector.shape_cast %29 : vector<8x128xf32> to vector<1x8x128xf32>
    %cst_14 = arith.constant dense<0.000000e+00> : vector<1xf32>
    %31 = vector.multi_reduction <add>, %30, %cst_14 [1, 2] : vector<1x8x128xf32> to vector<1xf32>
    %32 = vector.shape_cast %31 : vector<1xf32> to vector<1x1x1xf32>
    %33 = vector.extract %32[0, 0, 0] : f32 from vector<1x1x1xf32>
    %34 = arith.negf %12 : vector<8x128xf32>
    %35 = math.exp %34 : vector<8x128xf32>
    %cst_15 = arith.constant 1.000000e+00 : f32
    %36 = vector.broadcast %cst_15 : f32 to vector<8x128xf32>
    %37 = arith.addf %36, %35 : vector<8x128xf32>
    %38 = arith.divf %36, %37 : vector<8x128xf32>
    %39 = arith.negf %13 : vector<8x128xf32>
    %40 = math.exp %39 : vector<8x128xf32>
    %cst_16 = arith.constant 1.000000e+00 : f32
    %41 = vector.broadcast %cst_16 : f32 to vector<8x128xf32>
    %42 = arith.addf %41, %40 : vector<8x128xf32>
    %43 = arith.divf %41, %42 : vector<8x128xf32>
    %44 = math.tanh %14 : vector<8x128xf32>
    %45 = arith.negf %15 : vector<8x128xf32>
    %46 = math.exp %45 : vector<8x128xf32>
    %cst_17 = arith.constant 1.000000e+00 : f32
    %47 = vector.broadcast %cst_17 : f32 to vector<8x128xf32>
    %48 = arith.addf %47, %46 : vector<8x128xf32>
    %49 = arith.divf %47, %48 : vector<8x128xf32>
    %50 = arith.mulf %43, %6 : vector<8x128xf32>
    %cst_18 = arith.constant 2.000000e+01 : f32
    %51 = arith.cmpf olt, %33, %cst_18 : f32
    %cst_19 = arith.constant 2.000000e+01 : f32
    %52 = arith.cmpf ogt, %24, %cst_19 : f32
    %53 = arith.andi %51, %52 : i1
    %cst_20 = arith.constant 2.000000e+01 : f32
    %54 = arith.cmpf ogt, %33, %cst_20 : f32
    %cst_21 = arith.constant 2.000000e+01 : f32
    %55 = arith.cmpf olt, %24, %cst_21 : f32
    %56 = arith.andi %54, %55 : i1
    %57 = arith.mulf %38, %44 : vector<8x128xf32>
    %58 = arith.select %56, %44, %57 : vector<8x128xf32>
    %59 = arith.select %53, %38, %58 : vector<8x128xf32>
    %60 = arith.addf %50, %59 : vector<8x128xf32>
    %61 = math.tanh %60 : vector<8x128xf32>
    %62 = arith.mulf %49, %61 : vector<8x128xf32>
    %c1_i32 = arith.constant 1 : i32
    %c0_22 = arith.constant 0 : index
    %c0_23 = arith.constant 0 : index
    %63 = vector.load %arg7[%c0_22, %c0_23] : memref<8x128xf32, #tpu.memory_space<vmem>>, vector<8x128xf32>
    tpu.vector_store %arg7[%c0_22, %c0_23], %62 {strides = array<i32>} : memref<8x128xf32, #tpu.memory_space<vmem>>, vector<8x128xf32>,
    %c0_24 = arith.constant 0 : index
    %c0_25 = arith.constant 0 : index
    %64 = vector.load %arg8[%c0_24, %c0_25] : memref<8x128xf32, #tpu.memory_space<vmem>>, vector<8x128xf32>
    tpu.vector_store %arg8[%c0_24, %c0_25], %60 {strides = array<i32>} : memref<8x128xf32, #tpu.memory_space<vmem>>, vector<8x128xf32>,
    %c0_i32_26 = arith.constant 0 : i32
    %65 = arith.cmpi eq, %arg0, %c0_i32_26 : i32
    %66 = arith.extui %65 : i1 to i32
    %c0_i32_27 = arith.constant 0 : i32
    %67 = arith.cmpi ne, %66, %c0_i32_27 : i32
    scf.if %67 {
      %c0_28 = arith.constant 0 : index
      %c0_29 = arith.constant 0 : index
      %68 = vector.load %arg6[%c0_28, %c0_29] : memref<8x256xf32, #tpu.memory_space<vmem>>, vector<8x128xf32>
      tpu.vector_store %arg6[%c0_28, %c0_29], %62 {strides = array<i32>} : memref<8x256xf32, #tpu.memory_space<vmem>>, vector<8x128xf32>,
      %c0_30 = arith.constant 0 : index
      %c128 = arith.constant 128 : index
      %69 = vector.load %arg6[%c0_30, %c128] : memref<8x256xf32, #tpu.memory_space<vmem>>, vector<8x128xf32>
      tpu.vector_store %arg6[%c0_30, %c128], %60 {strides = array<i32>} : memref<8x256xf32, #tpu.memory_space<vmem>>, vector<8x128xf32>,
    } else {
    }
    return
  }
  func.func @transform_0(%arg0: i32) -> (i32, i32, i32) {
    %c0_i32 = arith.constant 0 : i32
    %c0_i32_0 = arith.constant 0 : i32
    %c0_i32_1 = arith.constant 0 : i32
    return %arg0, %c0_i32, %c0_i32_0 : i32, i32, i32
  }
  func.func @transform_1(%arg0: i32) -> (i32, i32) {
    %c0_i32 = arith.constant 0 : i32
    %c0_i32_0 = arith.constant 0 : i32
    %c0_i32_1 = arith.constant 0 : i32
    return %c0_i32, %c0_i32_0 : i32, i32
  }
  func.func @transform_2(%arg0: i32) -> (i32, i32) {
    %c0_i32 = arith.constant 0 : i32
    %c0_i32_0 = arith.constant 0 : i32
    %c0_i32_1 = arith.constant 0 : i32
    return %c0_i32, %c0_i32_0 : i32, i32
  }
  func.func @transform_3(%arg0: i32) -> (i32, i32) {
    %c0_i32 = arith.constant 0 : i32
    %c0_i32_0 = arith.constant 0 : i32
    %c0_i32_1 = arith.constant 0 : i32
    return %c0_i32, %c0_i32_0 : i32, i32
  }
  func.func @transform_4(%arg0: i32) -> (i32, i32) {
    %c0_i32 = arith.constant 0 : i32
    %c0_i32_0 = arith.constant 0 : i32
    %c0_i32_1 = arith.constant 0 : i32
    return %c0_i32, %c0_i32_0 : i32, i32
  }
  func.func @transform_5(%arg0: i32) -> (i32, i32) {
    %c0_i32 = arith.constant 0 : i32
    %c0_i32_0 = arith.constant 0 : i32
    %c0_i32_1 = arith.constant 0 : i32
    return %c0_i32, %c0_i32_0 : i32, i32
  }
}

</mosaic_0001>

<llo_original>
// kernel: tpu_custom_call.1
$region0: #{tpu_custom_call.1}
  #allocation0 [shape = 'u32[]', space=smem, size = 0x4, offset = 0x4, fixed_abs, tag = 'smem constant byte address 0x4 - core index']
  #allocation1 [shape = 'u32[72,128]{1,0:T(1,128)}', space=vmem, size = 0x9000, scoped, tag = 'internal scratch']
  #allocation2 [shape = 'f32[8,128]{1,0:T(8,128)}', space=vmem, size = 0x1000, scoped, tag = 'scratch operand']
  #allocation3 [shape = 'f32[8,128]{1,0:T(8,128)}', space=vmem, size = 0x1000, scoped, tag = 'scratch operand']
  %s0 = inlined_call_operand.hbm [shape: f32[1,8,512], index: 0, kind: input, shape index: {}]
  %s1 = inlined_call_operand.hbm [shape: f32[8,128], index: 1, kind: input, shape index: {}]
  %s2 = inlined_call_operand.hbm [shape: f32[8,128], index: 2, kind: input, shape index: {}]
  %s3 = inlined_call_operand.hbm [shape: f32[128,512], index: 3, kind: input, shape index: {}]
  %s4 = inlined_call_operand.hbm [shape: f32[8,128], index: 4, kind: input, shape index: {}]
  %s5 = inlined_call_operand.hbm [shape: f32[8,256], index: 5, kind: output, shape index: {}]
  %s6 = sld [smem:[#allocation0]]
  $region58: #{tpu_custom_call.1} parent=0
    _
  %s8 = ssub.s32 1, %s6
  %s9 = scalar_select 0, %s8, %s6
  $region1: #{tpu_custom_call.1} parent=0
    #allocation4 [shape = 'u8[16384]{0}', space=vmem, size = 0x4000, scoped, tag = 'input window, operand 0, single buffered']
    #allocation5 [shape = 's32[1]{0}', space=sflag, size = 0x4, scoped, tag = 'scoped memory for tpu_custom_call.1']
    #allocation6 [shape = 's32[1]{0}', space=sflag, size = 0x4, scoped, tag = 'scoped memory for tpu_custom_call.1']
    #allocation7 [shape = 'u8[4096]{0}', space=vmem, size = 0x1000, scoped, tag = 'input window, operand 1, single buffered']
    #allocation8 [shape = 's32[1]{0}', space=sflag, size = 0x4, scoped, tag = 'scoped memory for tpu_custom_call.1']
    #allocation9 [shape = 'u8[4096]{0}', space=vmem, size = 0x1000, scoped, tag = 'input window, operand 2, single buffered']
    #allocation10 [shape = 'u8[262144]{0}', space=vmem, size = 0x40000, scoped, tag = 'input window, operand 3, single buffered']
    #allocation11 [shape = 's32[1]{0}', space=sflag, size = 0x4, scoped, tag = 'scoped memory for tpu_custom_call.1']
    #allocation12 [shape = 'u8[4096]{0}', space=vmem, size = 0x1000, scoped, tag = 'input window, operand 4, single buffered']
    #allocation13 [shape = 'u8[8192]{0}', space=vmem, size = 0x2000, scoped, tag = 'output window, operand 0, single buffered']
    %10 = vsyncpa [#allocation5], 0
    %11 = vsyncpa [#allocation8], 0
    %12 = vsyncpa [#allocation11], 0
    %13 = vsyncpa [#allocation6], 0
    // Predicated region
    $region2: #{tpu_custom_call.1} parent=1 // pred_check
      _
    $region3: #{tpu_custom_call.1} parent=1 // pred_check_branch
      %15 = sbr.rel (0) target = $region5
    $region4: #{tpu_custom_call.1} parent=1 // pred_region
      %17 = vsyncadd [#allocation5], 0
      %s19 = sshll.u32 %s0, 4
      %s20 = int_to_ptr.hbm [resolvable:$true] %s19
      %s21 = sshll.u32 [#allocation4], 4
      %s22 = int_to_ptr.vmem [resolvable:$true] %s21
      %24 = dma.hbm_to_vmem [thread:$0]  %s20, 512, %s22, [#allocation5]
    $region5: #{tpu_custom_call.1} parent=1 // pred_fallthru
      _
    // Predicated region
    $region6: #{tpu_custom_call.1} parent=1 // pred_check
      _
    $region7: #{tpu_custom_call.1} parent=1 // pred_check_branch
      %26 = sbr.rel (0) target = $region9
    $region8: #{tpu_custom_call.1} parent=1 // pred_region
      %28 = vsyncadd [#allocation8], 0
      %s30 = sshll.u32 %s1, 4
      %s31 = int_to_ptr.hbm [resolvable:$true] %s30
      %s32 = sshll.u32 [#allocation7], 4
      %s33 = int_to_ptr.vmem [resolvable:$true] %s32
      %35 = dma.hbm_to_vmem [thread:$0]  %s31, 128, %s33, [#allocation8]
    $region9: #{tpu_custom_call.1} parent=1 // pred_fallthru
      _
    // Predicated region
    $region10: #{tpu_custom_call.1} parent=1 // pred_check
      _
    $region11: #{tpu_custom_call.1} parent=1 // pred_check_branch
      %37 = sbr.rel (0) target = $region13
    $region12: #{tpu_custom_call.1} parent=1 // pred_region
      %39 = vsyncadd [#allocation8], 0
      %s41 = sshll.u32 %s2, 4
      %s42 = int_to_ptr.hbm [resolvable:$true] %s41
      %s43 = sshll.u32 [#allocation9], 4
      %s44 = int_to_ptr.vmem [resolvable:$true] %s43
      %46 = dma.hbm_to_vmem [thread:$0]  %s42, 128, %s44, [#allocation8]
    $region13: #{tpu_custom_call.1} parent=1 // pred_fallthru
      _
    // Predicated region
    $region14: #{tpu_custom_call.1} parent=1 // pred_check
      _
    $region15: #{tpu_custom_call.1} parent=1 // pred_check_branch
      %48 = sbr.rel (0) target = $region17
    $region16: #{tpu_custom_call.1} parent=1 // pred_region
      %50 = vsyncadd [#allocation11], 0
      %s51 = sshll.u32 %s3, 4
      %s52 = int_to_ptr.hbm [resolvable:$true] %s51
      %s53 = sshll.u32 [#allocation10], 4
      %s54 = int_to_ptr.vmem [resolvable:$true] %s53
      %59 = dma.hbm_to_vmem [thread:$0]  %s52, 8192, %s54, [#allocation11], 512, 512, 32
    $region17: #{tpu_custom_call.1} parent=1 // pred_fallthru
      _
    // Predicated region
    $region18: #{tpu_custom_call.1} parent=1 // pred_check
      _
    $region19: #{tpu_custom_call.1} parent=1 // pred_check_branch
      %61 = sbr.rel (0) target = $region21
    $region20: #{tpu_custom_call.1} parent=1 // pred_region
      %63 = vsyncadd [#allocation11], 0
      %s65 = sshll.u32 %s4, 4
      %s66 = int_to_ptr.hbm [resolvable:$true] %s65
      %s67 = sshll.u32 [#allocation12], 4
      %s68 = int_to_ptr.vmem [resolvable:$true] %s67
      %70 = dma.hbm_to_vmem [thread:$0]  %s66, 128, %s68, [#allocation11]
    $region21: #{tpu_custom_call.1} parent=1 // pred_fallthru
      _
    // Predicated region
    $region22: #{tpu_custom_call.1} parent=1 // pred_check
      _
    $region23: #{tpu_custom_call.1} parent=1 // pred_check_branch
      %72 = sbr.rel (0) target = $region25
    $region24: #{tpu_custom_call.1} parent=1 // pred_region
      %74 = dma.done [#allocation5], 512
    $region25: #{tpu_custom_call.1} parent=1 // pred_fallthru
      _
    // Predicated region
    $region26: #{tpu_custom_call.1} parent=1 // pred_check
      _
    $region27: #{tpu_custom_call.1} parent=1 // pred_check_branch
      %76 = sbr.rel (0) target = $region29
    $region28: #{tpu_custom_call.1} parent=1 // pred_region
      %78 = dma.done [#allocation8], 128
    $region29: #{tpu_custom_call.1} parent=1 // pred_fallthru
      _
    // Predicated region
    $region30: #{tpu_custom_call.1} parent=1 // pred_check
      _
    $region31: #{tpu_custom_call.1} parent=1 // pred_check_branch
      %80 = sbr.rel (0) target = $region33
    $region32: #{tpu_custom_call.1} parent=1 // pred_region
      %82 = dma.done [#allocation8], 128
    $region33: #{tpu_custom_call.1} parent=1 // pred_fallthru
      _
    // Predicated region
    $region34: #{tpu_custom_call.1} parent=1 // pred_check
      _
    $region35: #{tpu_custom_call.1} parent=1 // pred_check_branch
      %84 = sbr.rel (0) target = $region37
    $region36: #{tpu_custom_call.1} parent=1 // pred_region
      %86 = dma.done [#allocation11], 8192
    $region37: #{tpu_custom_call.1} parent=1 // pred_fallthru
      _
    // Predicated region
    $region38: #{tpu_custom_call.1} parent=1 // pred_check
      _
    $region39: #{tpu_custom_call.1} parent=1 // pred_check_branch
      %88 = sbr.rel (0) target = $region41
    $region40: #{tpu_custom_call.1} parent=1 // pred_region
      %90 = dma.done [#allocation11], 128
    $region41: #{tpu_custom_call.1} parent=1 // pred_fallthru
      _
    %p91 = scmp.eq.s32.totalorder 0, 0
    // Predicated region
    $region42: #{tpu_custom_call.1} parent=1 // pred_check
      %p92 = pneg %p91
    $region43: #{tpu_custom_call.1} parent=1 // pred_check_branch
      %94 = sbr.rel (%p92) target = $region45
    $region44: #{tpu_custom_call.1} parent=1 // pred_region
      %v95 = vld [vmem:[#allocation7] sm:$0xff]
      %96 = vst [vmem:[#allocation2] sm:$0xff] %v95
      %v97 = vld [vmem:[#allocation9] sm:$0xff]
      %98 = vst [vmem:[#allocation3] sm:$0xff] %v97
    $region45: #{tpu_custom_call.1} parent=1 // pred_fallthru
      _
    %v99 = vld [vmem:[#allocation10] sm:$0xff]
    %v100 = vld [vmem:[#allocation10 + $0x8] sm:$0xff]
    %v101 = vld [vmem:[#allocation10 + $0x10] sm:$0xff]
    %v102 = vld [vmem:[#allocation10 + $0x18] sm:$0xff]
    %v103 = vld [vmem:[#allocation10 + $0x20] sm:$0xff]
    %v104 = vld [vmem:[#allocation10 + $0x28] sm:$0xff]
    %v105 = vld [vmem:[#allocation10 + $0x30] sm:$0xff]
    %v106 = vld [vmem:[#allocation10 + $0x38] sm:$0xff]
    %v107 = vld [vmem:[#allocation10 + $0x40] sm:$0xff]
    %v108 = vld [vmem:[#allocation10 + $0x48] sm:$0xff]
    %v109 = vld [vmem:[#allocation10 + $0x50] sm:$0xff]
    %v110 = vld [vmem:[#allocation10 + $0x58] sm:$0xff]
    %v111 = vld [vmem:[#allocation10 + $0x60] sm:$0xff]
    %v112 = vld [vmem:[#allocation10 + $0x68] sm:$0xff]
    %v113 = vld [vmem:[#allocation10 + $0x70] sm:$0xff]
    %v114 = vld [vmem:[#allocation10 + $0x78] sm:$0xff]
    %v115 = vld [vmem:[#allocation10 + $0x80] sm:$0xff]
    %v116 = vld [vmem:[#allocation10 + $0x88] sm:$0xff]
    %v117 = vld [vmem:[#allocation10 + $0x90] sm:$0xff]
    %v118 = vld [vmem:[#allocation10 + $0x98] sm:$0xff]
    %v119 = vld [vmem:[#allocation10 + $0xa0] sm:$0xff]
    %v120 = vld [vmem:[#allocation10 + $0xa8] sm:$0xff]
    %v121 = vld [vmem:[#allocation10 + $0xb0] sm:$0xff]
    %v122 = vld [vmem:[#allocation10 + $0xb8] sm:$0xff]
    %v123 = vld [vmem:[#allocation10 + $0xc0] sm:$0xff]
    %v124 = vld [vmem:[#allocation10 + $0xc8] sm:$0xff]
    %v125 = vld [vmem:[#allocation10 + $0xd0] sm:$0xff]
    %v126 = vld [vmem:[#allocation10 + $0xd8] sm:$0xff]
    %v127 = vld [vmem:[#allocation10 + $0xe0] sm:$0xff]
    %v128 = vld [vmem:[#allocation10 + $0xe8] sm:$0xff]
    %v129 = vld [vmem:[#allocation10 + $0xf0] sm:$0xff]
    %v130 = vld [vmem:[#allocation10 + $0xf8] sm:$0xff]
    %v131 = vld [vmem:[#allocation10 + $0x100] sm:$0xff]
    %v132 = vld [vmem:[#allocation10 + $0x108] sm:$0xff]
    %v133 = vld [vmem:[#allocation10 + $0x110] sm:$0xff]
    %v134 = vld [vmem:[#allocation10 + $0x118] sm:$0xff]
    %v135 = vld [vmem:[#allocation10 + $0x120] sm:$0xff]
    %v136 = vld [vmem:[#allocation10 + $0x128] sm:$0xff]
    %v137 = vld [vmem:[#allocation10 + $0x130] sm:$0xff]
    %v138 = vld [vmem:[#allocation10 + $0x138] sm:$0xff]
    %v139 = vld [vmem:[#allocation10 + $0x140] sm:$0xff]
    %v140 = vld [vmem:[#allocation10 + $0x148] sm:$0xff]
    %v141 = vld [vmem:[#allocation10 + $0x150] sm:$0xff]
    %v142 = vld [vmem:[#allocation10 + $0x158] sm:$0xff]
    %v143 = vld [vmem:[#allocation10 + $0x160] sm:$0xff]
    %v144 = vld [vmem:[#allocation10 + $0x168] sm:$0xff]
    %v145 = vld [vmem:[#allocation10 + $0x170] sm:$0xff]
    %v146 = vld [vmem:[#allocation10 + $0x178] sm:$0xff]
    %v147 = vld [vmem:[#allocation10 + $0x180] sm:$0xff]
    %v148 = vld [vmem:[#allocation10 + $0x188] sm:$0xff]
    %v149 = vld [vmem:[#allocation10 + $0x190] sm:$0xff]
    %v150 = vld [vmem:[#allocation10 + $0x198] sm:$0xff]
    %v151 = vld [vmem:[#allocation10 + $0x1a0] sm:$0xff]
    %v152 = vld [vmem:[#allocation10 + $0x1a8] sm:$0xff]
    %v153 = vld [vmem:[#allocation10 + $0x1b0] sm:$0xff]
    %v154 = vld [vmem:[#allocation10 + $0x1b8] sm:$0xff]
    %v155 = vld [vmem:[#allocation10 + $0x1c0] sm:$0xff]
    %v156 = vld [vmem:[#allocation10 + $0x1c8] sm:$0xff]
    %v157 = vld [vmem:[#allocation10 + $0x1d0] sm:$0xff]
    %v158 = vld [vmem:[#allocation10 + $0x1d8] sm:$0xff]
    %v159 = vld [vmem:[#allocation10 + $0x1e0] sm:$0xff]
    %v160 = vld [vmem:[#allocation10 + $0x1e8] sm:$0xff]
    %v161 = vld [vmem:[#allocation10 + $0x1f0] sm:$0xff]
    %v162 = vld [vmem:[#allocation10 + $0x1f8] sm:$0xff]
    %v163 = vld [vmem:[#allocation12] sm:$0xff]
    %v164 = vld [vmem:[#allocation2] sm:$0xff]
    %v165 = vld [vmem:[#allocation3] sm:$0xff]
    %v166 = vld [vmem:[#allocation4] sm:$0xff]
    %v167 = vld [vmem:[#allocation4 + $0x8] sm:$0xff]
    %v168 = vld [vmem:[#allocation4 + $0x10] sm:$0xff]
    %v169 = vld [vmem:[#allocation4 + $0x18] sm:$0xff]
    %170 = vmatpush.msra.mxu0 %v159
    %171 = vmatpush.msra.mxu0 %v155
    %172 = vmatpush.msra.mxu0 %v151
    %173 = vmatpush.msra.mxu0 %v147
    %174 = vmatpush.msra.mxu0 %v143
    %175 = vmatpush.msra.mxu0 %v139
    %176 = vmatpush.msra.mxu0 %v135
    %177 = vmatpush.msra.mxu0 %v131
    %178 = vmatpush.msra.mxu0 %v127
    %179 = vmatpush.msra.mxu0 %v123
    %180 = vmatpush.msra.mxu0 %v119
    %181 = vmatpush.msra.mxu0 %v115
    %182 = vmatpush.msra.mxu0 %v111
    %183 = vmatpush.msra.mxu0 %v107
    %184 = vmatpush.msra.mxu0 %v103
    %185 = vmatpush.msra.mxu0 %v99
    %186 = vmatmul.f32.gmra.mxu0 %v164
    %v187 = vpop.f32.mrf.mxu0
    %v188 = vadd.f32 %v166, %v187
    %189 = vdwg.mxu0
    %190 = vmatpush.msra.mxu0 %v160
    %191 = vmatpush.msra.mxu0 %v156
    %192 = vmatpush.msra.mxu0 %v152
    %193 = vmatpush.msra.mxu0 %v148
    %194 = vmatpush.msra.mxu0 %v144
    %195 = vmatpush.msra.mxu0 %v140
    %196 = vmatpush.msra.mxu0 %v136
    %197 = vmatpush.msra.mxu0 %v132
    %198 = vmatpush.msra.mxu0 %v128
    %199 = vmatpush.msra.mxu0 %v124
    %200 = vmatpush.msra.mxu0 %v120
    %201 = vmatpush.msra.mxu0 %v116
    %202 = vmatpush.msra.mxu0 %v112
    %203 = vmatpush.msra.mxu0 %v108
    %204 = vmatpush.msra.mxu0 %v104
    %205 = vmatpush.msra.mxu0 %v100
    %206 = vmatmul.f32.gmra.mxu0 %v164
    %v207 = vpop.f32.mrf.mxu0
    %v208 = vadd.f32 %v167, %v207
    %209 = vdwg.mxu0
    %210 = vmatpush.msra.mxu0 %v161
    %211 = vmatpush.msra.mxu0 %v157
    %212 = vmatpush.msra.mxu0 %v153
    %213 = vmatpush.msra.mxu0 %v149
    %214 = vmatpush.msra.mxu0 %v145
    %215 = vmatpush.msra.mxu0 %v141
    %216 = vmatpush.msra.mxu0 %v137
    %217 = vmatpush.msra.mxu0 %v133
    %218 = vmatpush.msra.mxu0 %v129
    %219 = vmatpush.msra.mxu0 %v125
    %220 = vmatpush.msra.mxu0 %v121
    %221 = vmatpush.msra.mxu0 %v117
    %222 = vmatpush.msra.mxu0 %v113
    %223 = vmatpush.msra.mxu0 %v109
    %224 = vmatpush.msra.mxu0 %v105
    %225 = vmatpush.msra.mxu0 %v101
    %226 = vmatmul.f32.gmra.mxu0 %v164
    %v227 = vpop.f32.mrf.mxu0
    %v228 = vadd.f32 %v168, %v227
    %229 = vdwg.mxu0
    %230 = vmatpush.msra.mxu0 %v162
    %231 = vmatpush.msra.mxu0 %v158
    %232 = vmatpush.msra.mxu0 %v154
    %233 = vmatpush.msra.mxu0 %v150
    %234 = vmatpush.msra.mxu0 %v146
    %235 = vmatpush.msra.mxu0 %v142
    %236 = vmatpush.msra.mxu0 %v138
    %237 = vmatpush.msra.mxu0 %v134
    %238 = vmatpush.msra.mxu0 %v130
    %239 = vmatpush.msra.mxu0 %v126
    %240 = vmatpush.msra.mxu0 %v122
    %241 = vmatpush.msra.mxu0 %v118
    %242 = vmatpush.msra.mxu0 %v114
    %243 = vmatpush.msra.mxu0 %v110
    %244 = vmatpush.msra.mxu0 %v106
    %245 = vmatpush.msra.mxu0 %v102
    %246 = vmatmul.f32.gmra.mxu0 %v164
    %v247 = vpop.f32.mrf.mxu0
    %v248 = vadd.f32 %v169, %v247
    %249 = vdwg.mxu0
    %vm250 = vcmp.gt.f32.partialorder %v188, 0.0
    %v251 = vsel %vm250, 1, 0
    %v252 = vcvt.s32.f32 %v251
    %v253 = vmul.f32 %v163, %v252
    %254 = vadd.xlane.f32.xlu0 %v253
    %v255 = vpop.xlane.xlu0 %254
    %v256 = vrot.slane %v255, 4
    %v257 = vadd.f32 %v255, %v256
    %v258 = vrot.slane %v257, 2
    %v259 = vadd.f32 %v257, %v258
    %v260 = vrot.slane %v259, 1
    %v261 = vadd.f32 %v259, %v260
    %s262 = vtos %v261
    %vm263 = vcmp.gt.f32.partialorder %v228, 0.54930615
    %v264 = vsel %vm263, 1, 0
    %v265 = vcvt.s32.f32 %v264
    %v266 = vmul.f32 %v163, %v265
    %267 = vadd.xlane.f32.xlu0 %v266
    %v268 = vpop.xlane.xlu0 %267
    %v269 = vrot.slane %v268, 4
    %v270 = vadd.f32 %v268, %v269
    %v271 = vrot.slane %v270, 2
    %v272 = vadd.f32 %v270, %v271
    %v273 = vrot.slane %v272, 1
    %v274 = vadd.f32 %v272, %v273
    %s275 = vtos %v274
    %v276 = vxor.u32 %v188, 2147483648
    %v277 = vmul.f32 %v276, 1.442695
    %v278 = vpow.pop %v277
    %v279 = vadd.f32 %v278, 1.0
    %v280 = vrcp.pop %v279
    %v281 = vmul.f32 %v279, %v280
    %v282 = vsub.f32 1.0, %v281
    %v283 = vmul.f32 %v280, %v282
    %v284 = vadd.f32 %v280, %v283
    %vm285 = vweird.f32 %v279
    %vm286 = vweird.f32 %v280
    %vm287 = vmor %vm285, %vm286
    %v288 = vsel %vm287, %v280, %v284
    %v289 = vand.u32 2147483647, %v279
    %vm290 = vcmp.eq.f32.partialorder %v289, 8.507059e+37
    %v291 = vand.u32 %v279, 2147483648
    %v292 = vor.u32 1.1754944e-38, %v291
    %v293 = vsel %vm290, %v292, %v288
    %v294 = vmul.f32 1.0, %v293
    %v295 = vxor.u32 %v208, 2147483648
    %v296 = vmul.f32 %v295, 1.442695
    %v297 = vpow.pop %v296
    %v298 = vadd.f32 %v297, 1.0
    %v299 = vrcp.pop %v298
    %v300 = vmul.f32 %v298, %v299
    %v301 = vsub.f32 1.0, %v300
    %v302 = vmul.f32 %v299, %v301
    %v303 = vadd.f32 %v299, %v302
    %vm304 = vweird.f32 %v298
    %vm305 = vweird.f32 %v299
    %vm306 = vmor %vm304, %vm305
    %v307 = vsel %vm306, %v299, %v303
    %v308 = vand.u32 2147483647, %v298
    %vm309 = vcmp.eq.f32.partialorder %v308, 8.507059e+37
    %v310 = vand.u32 %v298, 2147483648
    %v311 = vor.u32 1.1754944e-38, %v310
    %v312 = vsel %vm309, %v311, %v307
    %v313 = vmul.f32 1.0, %v312
    %v314 = vtanh.pop %v228
    %v315 = vxor.u32 %v248, 2147483648
    %v316 = vmul.f32 %v315, 1.442695
    %v317 = vpow.pop %v316
    %v318 = vadd.f32 %v317, 1.0
    %v319 = vrcp.pop %v318
    %v320 = vmul.f32 %v318, %v319
    %v321 = vsub.f32 1.0, %v320
    %v322 = vmul.f32 %v319, %v321
    %v323 = vadd.f32 %v319, %v322
    %vm324 = vweird.f32 %v318
    %vm325 = vweird.f32 %v319
    %vm326 = vmor %vm324, %vm325
    %v327 = vsel %vm326, %v319, %v323
    %v328 = vand.u32 2147483647, %v318
    %vm329 = vcmp.eq.f32.partialorder %v328, 8.507059e+37
    %v330 = vand.u32 %v318, 2147483648
    %v331 = vor.u32 1.1754944e-38, %v330
    %v332 = vsel %vm329, %v331, %v327
    %v333 = vmul.f32 1.0, %v332
    %v334 = vmul.f32 %v313, %v165
    %p335 = scmp.lt.f32.partialorder %s275, 20.0
    %p336 = scmp.gt.f32.partialorder %s262, 20.0
    %p337 = pnand %p335, %p336
    %p338 = pneg %p337
    %p339 = scmp.gt.f32.partialorder %s275, 20.0
    %p340 = scmp.lt.f32.partialorder %s262, 20.0
    %p341 = pnand %p339, %p340
    %p342 = pneg %p341
    %v343 = vmul.f32 %v294, %v314
    %s344 = scalar_select %p342, 1, 0
    %v345 = vstv %s344
    %vm346 = vcmp.eq.s32.totalorder %v345, 1
    %v347 = vsel %vm346, %v314, %v343
    %s348 = scalar_select %p338, 1, 0
    %v349 = vstv %s348
    %vm350 = vcmp.eq.s32.totalorder %v349, 1
    %v351 = vsel %vm350, %v294, %v347
    %v352 = vadd.f32 %v334, %v351
    %v353 = vtanh.pop %v352
    %v354 = vmul.f32 %v333, %v353
    %355 = vst [vmem:[#allocation2] sm:$0xff] %v354
    %356 = vst [vmem:[#allocation3] sm:$0xff] %v352
    // Predicated region
    $region46: #{tpu_custom_call.1} parent=1 // pred_check
      %p357 = pneg %p91
    $region47: #{tpu_custom_call.1} parent=1 // pred_check_branch
      %359 = sbr.rel (%p357) target = $region49
    $region48: #{tpu_custom_call.1} parent=1 // pred_region
      %360 = vst [vmem:[#allocation13] sm:$0xff] %v354
      %361 = vst [vmem:[#allocation13 + $0x8] sm:$0xff] %v352
    $region49: #{tpu_custom_call.1} parent=1 // pred_fallthru
      _
    // Predicated region
    $region50: #{tpu_custom_call.1} parent=1 // pred_check
      _
    $region51: #{tpu_custom_call.1} parent=1 // pred_check_branch
      %363 = sbr.rel (0) target = $region53
    $region52: #{tpu_custom_call.1} parent=1 // pred_region
      %365 = vsyncadd [#allocation6], 0
      %s367 = sshll.u32 [#allocation13], 4
      %s368 = int_to_ptr.vmem [resolvable:$true] %s367
      %s369 = sshll.u32 %s5, 4
      %s370 = int_to_ptr.hbm [resolvable:$true] %s369
      %372 = dma.vmem_to_hbm [thread:$0]  %s368, 256, %s370, [#allocation6]
    $region53: #{tpu_custom_call.1} parent=1 // pred_fallthru
      _
    // Predicated region
    $region54: #{tpu_custom_call.1} parent=1 // pred_check
      _
    $region55: #{tpu_custom_call.1} parent=1 // pred_check_branch
      %374 = sbr.rel (0) target = $region57
    $region56: #{tpu_custom_call.1} parent=1 // pred_region
      %376 = dma.done [#allocation6], 256
    $region57: #{tpu_custom_call.1} parent=1 // pred_fallthru
      _
    %377 = vsyncpa [#allocation5], 1
    %378 = vsyncpa [#allocation8], 1
    %379 = vsyncpa [#allocation11], 1
    %380 = vsyncpa [#allocation6], 1

</llo_original>
